<compile_context>
chip_gen: v7x
topology: tpu7x:2x2x1
jax: 0.10.0
libtpu: 0.0.40
codegen_flags: <defaults>
</compile_context>

<pallas_src>
import functools

import jax
import jax.numpy as jnp
from jax import lax
from jax.experimental import pallas as pl
from jax.experimental.pallas import tpu as pltpu


def _round_up(v, m):
    return (v + m - 1) // m * m


def _vmem_request_cap_bytes():
    """Per-generation cap on requested VMEM (leave headroom for Mosaic scratch)."""
    try:
        cap = int(pltpu.get_tpu_info().vmem_capacity_bytes)
    except Exception:
        cap = 64 * 1024 * 1024          # unknown: assume the tightest (v7x)
    # 128 MiB (v5e/v6e) -> 112 MiB ; 64 MiB (v7x) -> 56 MiB
    return cap - max(8 * 1024 * 1024, cap // 8)


def downblock_forward(x, weight, bias=None, *, out_dtype=jnp.float32, tc=64):
    """x: (N, C_in, H, W) f32; weight: (C_out, C_in, 3, 3) f32.

    `bias` is accepted for API parity but unused: adding a per-channel constant
    before InstanceNorm2d(affine=False) is exactly cancelled by the mean
    subtraction, so dropping it is a zero-change optimization.
    `out_dtype=jnp.bfloat16` halves output writeback (kernel is HBM-bound).
    """
    del bias
    N, C, H, W = x.shape
    C_out = weight.shape[0]
    assert H % 2 == 0 and W % 2 == 0, "stride-2 DownBlock kernel assumes even H, W"

    H_out, W_out = H // 2, W // 2
    Hh, Wh = H_out + 1, W_out + 1          # phase-tensor spatial dims (padded input / 2)
    P = H_out * W_out                       # true number of output pixels
    Pe = H_out * Wh                         # extended width (1 garbage col per row)
    Pe_pad = _round_up(Pe, 128)             # lane-dense output width
    Cp = 4 * C                              # phase-packed channels
    Cp_pad = _round_up(Cp, 16)              # bf16 sublane tile = 16 rows
    C_out_pad = _round_up(C_out, 16)
    L = _round_up(Wh + 1 + Pe_pad, 128)     # flattened input length (+ room for shifted windows)

    # ---- C_out tile size: largest power-of-two slice of `tc` dividing C_out_pad
    tc_eff = min(tc, C_out_pad)
    while tc_eff > 16 and C_out_pad % tc_eff:
        tc_eff //= 2
    tc_eff = max(16, tc_eff)
    C_out_pad = _round_up(C_out_pad, tc_eff)
    n_ctiles = C_out_pad // tc_eff

    # ---- phase-pack the padded input: (N, C, H+2, W+2) -> (N, 4C, Hh*Wh) ----
    xp = jnp.pad(x, ((0, 0), (0, 0), (1, 1), (1, 1)))
    xph = xp.reshape(N, C, Hh, 2, Wh, 2).transpose(0, 1, 3, 5, 2, 4)  # (N, C, rh, rw, Hh, Wh)
    xf = xph.reshape(N, Cp, Hh * Wh)
    xf = jnp.pad(xf, ((0, 0), (0, Cp_pad - Cp), (0, L - Hh * Wh)))
    xf = xf.astype(jnp.bfloat16)                                      # bf16 MXU input stream

    # ---- pack the 3x3 stride-2 weights as four (C_out, 4C) taps ------------
    # tap t = ah*2 + aw; packed channel c4 = c*4 + rh*2 + rw; kh = 2*ah + rh.
    w2 = jnp.zeros((2, 2, C_out, C, 2, 2), weight.dtype)
    for kh in range(3):
        for kw in range(3):
            ah, rh = divmod(kh, 2)
            aw, rw = divmod(kw, 2)
            w2 = w2.at[ah, aw, :, :, rh, rw].set(weight[:, :, kh, kw])
    w2 = w2.reshape(4, C_out, Cp)
    w2 = jnp.pad(w2, ((0, 0), (0, C_out_pad - C_out), (0, Cp_pad - Cp)))
    w2 = w2.astype(jnp.bfloat16)

    shifts = (0, 1, Wh, Wh + 1)     # window start per tap t = ah*2 + aw
    inv_count = 1.0 / float(P)
    eps = 1e-5

    def kernel(x_ref, w_ref, out_ref):
        # x_ref: (Cp_pad, L) bf16 ; w_ref: (4, tc_eff, Cp_pad) bf16
        # out_ref: (tc_eff, Pe_pad) out_dtype
        xv = x_ref[...]
        # Fused conv: 4 accumulating matmuls against shifted windows (MXU, f32 acc).
        acc = jnp.dot(w_ref[0], xv[:, shifts[0]:shifts[0] + Pe_pad],
                      preferred_element_type=jnp.float32)
        for t in range(1, 4):
            s = shifts[t]
            acc = acc + jnp.dot(w_ref[t], xv[:, s:s + Pe_pad],
                                preferred_element_type=jnp.float32)
        # InstanceNorm2d(affine=False, eps=1e-5, biased var) over the valid
        # spatial positions only (mask generated in-kernel), then ReLU.
        # One-pass moments: both lane reductions are independent XLU pushes.
        q = lax.broadcasted_iota(jnp.int32, (1, Pe_pad), 1)
        m = ((q < Pe) & ((q % Wh) < W_out)).astype(jnp.float32)    # (1, Pe_pad)
        am = acc * m
        s1 = jnp.sum(am, axis=1, keepdims=True)
        s2 = jnp.sum(am * acc, axis=1, keepdims=True)
        mean = s1 * inv_count
        var = jnp.maximum(s2 * inv_count - mean * mean, 0.0)
        y = jnp.maximum((acc - mean) * lax.rsqrt(var + eps), 0.0)
        out_ref[...] = y.astype(out_ref.dtype)

    # VMEM budget: double-buffered bf16 input / weight blocks, double-buffered
    # output block, plus the live f32 acc / masked / centered temporaries.
    out_itemsize = jnp.dtype(out_dtype).itemsize
    x_block_b = Cp_pad * L * 2
    w_block_b = 4 * tc_eff * Cp_pad * 2
    out_block_b = tc_eff * Pe_pad * out_itemsize
    tmp_b = 3 * tc_eff * Pe_pad * 4
    budget = 2 * (x_block_b + w_block_b + out_block_b) + tmp_b
    vmem_limit = int(min(max(int(budget * 1.25) + (4 << 20), 32 << 20),
                         _vmem_request_cap_bytes()))

    out_ext = pl.pallas_call(
        kernel,
        out_shape=jax.ShapeDtypeStruct((N, C_out_pad, Pe_pad), out_dtype),
        grid_spec=pltpu.PrefetchScalarGridSpec(
            num_scalar_prefetch=0,
            grid=(N, n_ctiles),
            in_specs=[
                # x block index constant over j -> stays resident across the j loop.
                pl.BlockSpec((pl.Squeezed(), Cp_pad, L), lambda n, j: (n, 0, 0)),
                pl.BlockSpec((4, tc_eff, Cp_pad), lambda n, j: (0, j, 0)),
            ],
            out_specs=pl.BlockSpec((pl.Squeezed(), tc_eff, Pe_pad),
                                   lambda n, j: (n, j, 0)),
        ),
        compiler_params=pltpu.CompilerParams(
            dimension_semantics=("parallel", "parallel"),
            vmem_limit_bytes=vmem_limit),
    )(xf, w2)

    # (N, C_out_pad, Pe_pad): drop padded channels + garbage columns -> NCHW.
    out = out_ext[:, :C_out, :Pe].reshape(N, C_out, H_out, Wh)[:, :, :, :W_out]
    return out


def _reference_forward(x, weight, bias):
    """Pure-JAX reference matching the PyTorch DownBlock semantics (f32)."""
    y = lax.conv_general_dilated(
        x, weight, window_strides=(2, 2), padding=((1, 1), (1, 1)),
        dimension_numbers=("NCHW", "OIHW", "NCHW"),
        precision=lax.Precision.HIGHEST)
    y = y + bias.reshape(1, -1, 1, 1)
    mean = jnp.mean(y, axis=(2, 3), keepdims=True)
    var = jnp.mean((y - mean) ** 2, axis=(2, 3), keepdims=True)
    y = (y - mean) / jnp.sqrt(var + 1e-5)
    return jnp.maximum(y, 0.0)


if __name__ == "__main__":
    key = jax.random.PRNGKey(0)
    k_x, k_w, k_b = jax.random.split(key, 3)

    N, C_in, H, W = 2, 4, 16, 16
    C_out = 8

    x = jax.random.normal(k_x, (N, C_in, H, W), dtype=jnp.float32)
    fan_in = C_in * 3 * 3
    bound = 1.0 / (fan_in ** 0.5)
    weight = jax.random.uniform(k_w, (C_out, C_in, 3, 3), jnp.float32, -bound, bound)
    bias = jax.random.uniform(k_b, (C_out,), jnp.float32, -bound, bound)

    # ---- f32-output path (exact module semantics) ----
    fwd_f32 = jax.jit(functools.partial(downblock_forward, out_dtype=jnp.float32))
    out = jax.block_until_ready(fwd_f32(x, weight, bias))
    assert out.shape == (N, C_out, H // 2, W // 2), out.shape

    # Strict check: reference whose conv inputs are bf16-rounded like the
    # kernel's MXU operands (f32 accumulation in both paths).
    ref_bf16 = _reference_forward(
        x.astype(jnp.bfloat16).astype(jnp.float32),
        weight.astype(jnp.bfloat16).astype(jnp.float32), bias)
    err_strict = float(jnp.max(jnp.abs(out - ref_bf16)))
    assert jnp.allclose(out, ref_bf16, atol=2e-3, rtol=2e-3), err_strict

    # Loose check against the exact f32 module semantics (bf16 MXU inputs only
    # perturb the pre-norm conv by ~1e-3 relative).
    ref = jax.block_until_ready(_reference_forward(x, weight, bias))
    err = float(jnp.max(jnp.abs(out - ref)))
    assert jnp.allclose(out, ref, atol=5e-2, rtol=5e-2), err

    # ---- bf16-output path (halved writeback for mem-bound deployments) ----
    fwd_bf16 = jax.jit(functools.partial(downblock_forward, out_dtype=jnp.bfloat16))
    out_b = jax.block_until_ready(fwd_bf16(x, weight, bias))
    assert out_b.dtype == jnp.bfloat16 and out_b.shape == out.shape
    err_b = float(jnp.max(jnp.abs(out_b.astype(jnp.float32) - ref)))
    assert jnp.allclose(out_b.astype(jnp.float32), ref, atol=5e-2, rtol=5e-2), err_b

    print("KERNEL_OK")
</pallas_src>

<mosaic_0001>
module attributes {stable_mosaic.version = 11 : i64} {
  func.func @kernel(%arg0: i32, %arg1: i32, %arg2: memref<1x16x256xbf16, #tpu.memory_space<vmem>>, %arg3: memref<4x16x16xbf16, #tpu.memory_space<vmem>>, %arg4: memref<1x16x128xf32, #tpu.memory_space<vmem>>) attributes {dimension_semantics = [#tpu.dimension_semantics<parallel>, #tpu.dimension_semantics<parallel>], iteration_bounds = array<i64: 2, 1>, scalar_prefetch = 0 : i64, scratch_operands = 0 : i64, tpu.core_type = #tpu.core_type<tc>, window_params = [{transform_indices = @transform_0, window_bounds = array<i64: 1, 16, 256>}, {transform_indices = @transform_1, window_bounds = array<i64: 4, 16, 16>}, {transform_indices = @transform_2, window_bounds = array<i64: 1, 16, 128>}]} {
    %c0 = arith.constant 0 : index
    %c0_0 = arith.constant 0 : index
    %c0_1 = arith.constant 0 : index
    %0 = vector.load %arg2[%c0, %c0_0, %c0_1] : memref<1x16x256xbf16, #tpu.memory_space<vmem>>, vector<1x16x256xbf16>
    %1 = vector.shape_cast %0 : vector<1x16x256xbf16> to vector<16x256xbf16>
    %c0_2 = arith.constant 0 : index
    %c0_3 = arith.constant 0 : index
    %c0_4 = arith.constant 0 : index
    %2 = vector.load %arg3[%c0_2, %c0_3, %c0_4] : memref<4x16x16xbf16, #tpu.memory_space<vmem>>, vector<1x16x16xbf16>
    %3 = vector.shape_cast %2 : vector<1x16x16xbf16> to vector<16x16xbf16>
    %4 = vector.extract_strided_slice %1 {offsets = [0, 0], sizes = [16, 128], strides = [1, 1]} : vector<16x256xbf16> to vector<16x128xbf16>
    %cst = arith.constant dense<0.000000e+00> : vector<16x128xf32>
    %5 = tpu.matmul %3, %4, %cst {dimension_numbers = #tpu.dot_dimension_numbers<[1], [0], [0], [1], [0, 0, 1, 1], [], []>} : vector<16x16xbf16>, vector<16x128xbf16>, vector<16x128xf32> -> vector<16x128xf32>
    %c1 = arith.constant 1 : index
    %c0_5 = arith.constant 0 : index
    %c0_6 = arith.constant 0 : index
    %6 = vector.load %arg3[%c1, %c0_5, %c0_6] : memref<4x16x16xbf16, #tpu.memory_space<vmem>>, vector<1x16x16xbf16>
    %7 = vector.shape_cast %6 : vector<1x16x16xbf16> to vector<16x16xbf16>
    %8 = vector.extract_strided_slice %1 {offsets = [0, 1], sizes = [16, 128], strides = [1, 1]} : vector<16x256xbf16> to vector<16x128xbf16>
    %cst_7 = arith.constant dense<0.000000e+00> : vector<16x128xf32>
    %9 = tpu.matmul %7, %8, %cst_7 {dimension_numbers = #tpu.dot_dimension_numbers<[1], [0], [0], [1], [0, 0, 1, 1], [], []>} : vector<16x16xbf16>, vector<16x128xbf16>, vector<16x128xf32> -> vector<16x128xf32>
    %10 = arith.addf %5, %9 : vector<16x128xf32>
    %c2 = arith.constant 2 : index
    %c0_8 = arith.constant 0 : index
    %c0_9 = arith.constant 0 : index
    %11 = vector.load %arg3[%c2, %c0_8, %c0_9] : memref<4x16x16xbf16, #tpu.memory_space<vmem>>, vector<1x16x16xbf16>
    %12 = vector.shape_cast %11 : vector<1x16x16xbf16> to vector<16x16xbf16>
    %13 = vector.extract_strided_slice %1 {offsets = [0, 9], sizes = [16, 128], strides = [1, 1]} : vector<16x256xbf16> to vector<16x128xbf16>
    %cst_10 = arith.constant dense<0.000000e+00> : vector<16x128xf32>
    %14 = tpu.matmul %12, %13, %cst_10 {dimension_numbers = #tpu.dot_dimension_numbers<[1], [0], [0], [1], [0, 0, 1, 1], [], []>} : vector<16x16xbf16>, vector<16x128xbf16>, vector<16x128xf32> -> vector<16x128xf32>
    %15 = arith.addf %10, %14 : vector<16x128xf32>
    %c3 = arith.constant 3 : index
    %c0_11 = arith.constant 0 : index
    %c0_12 = arith.constant 0 : index
    %16 = vector.load %arg3[%c3, %c0_11, %c0_12] : memref<4x16x16xbf16, #tpu.memory_space<vmem>>, vector<1x16x16xbf16>
    %17 = vector.shape_cast %16 : vector<1x16x16xbf16> to vector<16x16xbf16>
    %18 = vector.extract_strided_slice %1 {offsets = [0, 10], sizes = [16, 128], strides = [1, 1]} : vector<16x256xbf16> to vector<16x128xbf16>
    %cst_13 = arith.constant dense<0.000000e+00> : vector<16x128xf32>
    %19 = tpu.matmul %17, %18, %cst_13 {dimension_numbers = #tpu.dot_dimension_numbers<[1], [0], [0], [1], [0, 0, 1, 1], [], []>} : vector<16x16xbf16>, vector<16x128xbf16>, vector<16x128xf32> -> vector<16x128xf32>
    %20 = arith.addf %15, %19 : vector<16x128xf32>
    %21 = tpu.iota {dimensions = array<i32: 1>} : vector<1x128xi32>
    %c72_i32 = arith.constant 72 : i32
    %22 = vector.broadcast %c72_i32 : i32 to vector<1x128xi32>
    %23 = arith.cmpi slt, %21, %22 : vector<1x128xi32>
    %c9_i32 = arith.constant 9 : i32
    %c0_i32 = arith.constant 0 : i32
    %24 = arith.cmpi eq, %c9_i32, %c0_i32 : i32
    %c1_i32 = arith.constant 1 : i32
    %25 = arith.select %24, %c1_i32, %c9_i32 : i32
    %26 = vector.broadcast %25 : i32 to vector<1x128xi32>
    %27 = arith.remsi %21, %26 : vector<1x128xi32>
    %c0_i32_14 = arith.constant 0 : i32
    %28 = vector.broadcast %c0_i32_14 : i32 to vector<1x128xi32>
    %29 = arith.cmpi ne, %27, %28 : vector<1x128xi32>
    %c0_i32_15 = arith.constant 0 : i32
    %30 = vector.broadcast %c0_i32_15 : i32 to vector<1x128xi32>
    %31 = arith.cmpi slt, %27, %30 : vector<1x128xi32>
    %c0_i32_16 = arith.constant 0 : i32
    %32 = arith.cmpi slt, %25, %c0_i32_16 : i32
    %33 = vector.broadcast %32 : i1 to vector<1x128xi1>
    %34 = vector.broadcast %33 : vector<1x128xi1> to vector<1x128xi1>
    %35 = arith.xori %31, %34 : vector<1x128xi1>
    %36 = arith.andi %35, %29 : vector<1x128xi1>
    %37 = vector.broadcast %25 : i32 to vector<1x128xi32>
    %38 = arith.addi %27, %37 : vector<1x128xi32>
    %39 = arith.select %36, %38, %27 : vector<1x128xi1>, vector<1x128xi32>
    %c8_i32 = arith.constant 8 : i32
    %40 = vector.broadcast %c8_i32 : i32 to vector<1x128xi32>
    %41 = arith.cmpi slt, %39, %40 : vector<1x128xi32>
    %42 = arith.andi %23, %41 : vector<1x128xi1>
    %43 = arith.extui %42 : vector<1x128xi1> to vector<1x128xi32>
    %44 = arith.sitofp %43 : vector<1x128xi32> to vector<1x128xf32>
    %45 = vector.broadcast %44 : vector<1x128xf32> to vector<16x128xf32>
    %46 = arith.mulf %20, %45 : vector<16x128xf32>
    %cst_17 = arith.constant dense<0.000000e+00> : vector<16xf32>
    %47 = vector.multi_reduction <add>, %46, %cst_17 [1] : vector<16x128xf32> to vector<16xf32>
    %48 = vector.shape_cast %47 : vector<16xf32> to vector<16x1xf32>
    %49 = arith.mulf %46, %20 : vector<16x128xf32>
    %cst_18 = arith.constant dense<0.000000e+00> : vector<16xf32>
    %50 = vector.multi_reduction <add>, %49, %cst_18 [1] : vector<16x128xf32> to vector<16xf32>
    %51 = vector.shape_cast %50 : vector<16xf32> to vector<16x1xf32>
    %cst_19 = arith.constant 1.562500e-02 : f32
    %52 = vector.broadcast %cst_19 : f32 to vector<16x1xf32>
    %53 = arith.mulf %48, %52 : vector<16x1xf32>
    %cst_20 = arith.constant 1.562500e-02 : f32
    %54 = vector.broadcast %cst_20 : f32 to vector<16x1xf32>
    %55 = arith.mulf %51, %54 : vector<16x1xf32>
    %56 = arith.mulf %53, %53 : vector<16x1xf32>
    %57 = arith.subf %55, %56 : vector<16x1xf32>
    %cst_21 = arith.constant 0.000000e+00 : f32
    %58 = vector.broadcast %cst_21 : f32 to vector<16x1xf32>
    %59 = arith.maximumf %57, %58 : vector<16x1xf32>
    %60 = vector.broadcast %53 : vector<16x1xf32> to vector<16x128xf32>
    %61 = arith.subf %20, %60 : vector<16x128xf32>
    %cst_22 = arith.constant 9.99999974E-6 : f32
    %62 = vector.broadcast %cst_22 : f32 to vector<16x1xf32>
    %63 = arith.addf %59, %62 : vector<16x1xf32>
    %64 = math.rsqrt %63 : vector<16x1xf32>
    %65 = vector.broadcast %64 : vector<16x1xf32> to vector<16x128xf32>
    %66 = arith.mulf %61, %65 : vector<16x128xf32>
    %cst_23 = arith.constant 0.000000e+00 : f32
    %67 = vector.broadcast %cst_23 : f32 to vector<16x128xf32>
    %68 = arith.maximumf %66, %67 : vector<16x128xf32>
    %c0_24 = arith.constant 0 : index
    %c0_25 = arith.constant 0 : index
    %c0_26 = arith.constant 0 : index
    %69 = vector.load %arg4[%c0_24, %c0_25, %c0_26] : memref<1x16x128xf32, #tpu.memory_space<vmem>>, vector<1x16x128xf32>
    %70 = vector.shape_cast %69 : vector<1x16x128xf32> to vector<16x128xf32>
    %71 = vector.shape_cast %68 : vector<16x128xf32> to vector<1x16x128xf32>
    tpu.vector_store %arg4[%c0_24, %c0_25, %c0_26], %71 {strides = array<i32>} : memref<1x16x128xf32, #tpu.memory_space<vmem>>, vector<1x16x128xf32>,
    return
  }
  func.func @transform_0(%arg0: i32, %arg1: i32) -> (i32, i32, i32) {
    %c0_i32 = arith.constant 0 : i32
    %c0_i32_0 = arith.constant 0 : i32
    %c0_i32_1 = arith.constant 0 : i32
    return %arg0, %c0_i32, %c0_i32_0 : i32, i32, i32
  }
  func.func @transform_1(%arg0: i32, %arg1: i32) -> (i32, i32, i32) {
    %c0_i32 = arith.constant 0 : i32
    %c0_i32_0 = arith.constant 0 : i32
    %c0_i32_1 = arith.constant 0 : i32
    return %c0_i32, %arg1, %c0_i32_0 : i32, i32, i32
  }
  func.func @transform_2(%arg0: i32, %arg1: i32) -> (i32, i32, i32) {
    %c0_i32 = arith.constant 0 : i32
    %c0_i32_0 = arith.constant 0 : i32
    return %arg0, %arg1, %c0_i32 : i32, i32, i32
  }
}

</mosaic_0001>

<llo_original>
// kernel: downblock_forward.1
$region0: #{downblock_forward.1}
  #allocation0 [shape = 'u32[]', space=smem, size = 0x4, offset = 0x4, fixed_abs, tag = 'smem constant byte address 0x4 - core index']
  #allocation1 [shape = 'u32[144,128]{1,0:T(1,128)}', space=vmem, size = 0x12000, scoped, tag = 'internal scratch']
  %s0 = inlined_call_operand.vmem [shape: bf16[2,16,256], index: 0, kind: input, shape index: {}]
  %s1 = inlined_call_operand.vmem [shape: bf16[4,16,16], index: 1, kind: input, shape index: {}]
  %s2 = inlined_call_operand.vmem [shape: f32[2,16,128], index: 2, kind: output, shape index: {}]
  %s3 = sld [smem:[#allocation0]]
  $region41: #{downblock_forward.1} parent=0
    _
  %s5 = ssub.s32 1, %s3
  %s6 = scalar_select 0, %s5, %s3
  loop: start=0, step=1, limit=4
  $region2: #{downblock_forward.1} parent=0 // loop_pre_header
    _
  $region3: #{downblock_forward.1} parent=0 // loop_header
    %s8 = sphi 0, %s12
    %p9 = scmp.ge.s32.totalorder %s8, 4
    %s15 = sphi 0, %s27
    %s16 = sphi 0, %s23
    %s17 = sphi 0, %s15
    %s18 = sphi 0, %s16
    %s19 = sphi 0, %s17
    %s20 = sphi 0, %s18
    %s30 = sphi 0, %s32
    %s33 = sphi 0, %s30
    %s34 = sphi 0, %s33
    %s50 = sphi 0, %s34
    %s56 = sphi 0, %s58
    %s59 = sphi 0, %s56
    %s60 = sphi 0, %s59
    %s76 = sphi 0, %s60
    %s84 = sphi 0, %s86
    %s87 = sphi 0, %s84
    %s88 = sphi 0, %s87
    %s104 = sphi 0, %s88
  $region4: #{downblock_forward.1} parent=0 // loop_header_branch
    %11 = sbr.rel (%p9) target = $region8
  $region5: #{downblock_forward.1} parent=0 // loop_body
    %s13 = ssub.s32 %s8, 1
    %s14 = ssub.s32 %s8, 2
    %s21 = sadd.s32 1, %s16
    %p22 = scmp.ge.s32.totalorder %s21, 1
    %s23 = scalar_select %p22, 0, %s21
    %s24 = sadd.s32 1, %s15
    %s25 = scalar_select %p22, %s24, %s15
    %p26 = scmp.ge.s32.totalorder %s25, 2
    %s27 = scalar_select %p26, 0, %s25
    %s28 = ssub.s32 %s15, %s27
    %p29 = scmp.eq.s32.totalorder %s28, 0
    %s31 = sadd.s32 %s30, 1
    %s32 = scalar_select %p29, %s30, %s31
    %p35 = pneg %p29
    %p36 = scmp.eq.s32.totalorder %s8, 1
    %p37 = por %p35, %p36
    %p38 = scmp.ne.s32.totalorder %s30, %s33
    %p39 = scmp.eq.s32.totalorder %s8, 0
    %p40 = por %p38, %p39
    %p41 = scmp.ne.s32.totalorder %s30, %s33
    %p42 = scmp.eq.s32.totalorder %s13, 1
    %p43 = por %p41, %p42
    %p44 = scmp.ne.s32.totalorder %s33, %s34
    %p45 = scmp.eq.s32.totalorder %s13, 0
    %p46 = por %p44, %p45
    %p47 = scmp.ne.s32.totalorder %s33, %s34
    %p48 = scmp.eq.s32.totalorder %s14, 1
    %p49 = por %p47, %p48
    %p51 = scmp.ne.s32.totalorder %s34, %s50
    %p52 = scmp.eq.s32.totalorder %s14, 0
    %p53 = por %p51, %p52
    %s54 = ssub.s32 %s16, %s23
    %p55 = scmp.eq.s32.totalorder %s54, 0
    %s57 = sadd.s32 %s56, 1
    %s58 = scalar_select %p55, %s56, %s57
    %p61 = pneg %p55
    %p62 = scmp.eq.s32.totalorder %s8, 1
    %p63 = por %p61, %p62
    %p64 = scmp.ne.s32.totalorder %s56, %s59
    %p65 = scmp.eq.s32.totalorder %s8, 0
    %p66 = por %p64, %p65
    %p67 = scmp.ne.s32.totalorder %s56, %s59
    %p68 = scmp.eq.s32.totalorder %s13, 1
    %p69 = por %p67, %p68
    %p70 = scmp.ne.s32.totalorder %s59, %s60
    %p71 = scmp.eq.s32.totalorder %s13, 0
    %p72 = por %p70, %p71
    %p73 = scmp.ne.s32.totalorder %s59, %s60
    %p74 = scmp.eq.s32.totalorder %s14, 1
    %p75 = por %p73, %p74
    %p77 = scmp.ne.s32.totalorder %s60, %s76
    %p78 = scmp.eq.s32.totalorder %s14, 0
    %p79 = por %p77, %p78
    %s80 = ssub.s32 %s15, %s27
    %s81 = ssub.s32 %s16, %s23
    %s82 = sor.u32 %s80, %s81
    %p83 = scmp.eq.s32.totalorder %s82, 0
    %s85 = sadd.s32 %s84, 1
    %s86 = scalar_select %p83, %s84, %s85
    %p89 = pneg %p83
    %p90 = scmp.eq.s32.totalorder %s8, 1
    %p91 = por %p89, %p90
    %p92 = scmp.ne.s32.totalorder %s84, %s87
    %p93 = scmp.eq.s32.totalorder %s8, 0
    %p94 = por %p92, %p93
    %p95 = scmp.ne.s32.totalorder %s84, %s87
    %p96 = scmp.eq.s32.totalorder %s13, 1
    %p97 = por %p95, %p96
    %p98 = scmp.ne.s32.totalorder %s87, %s88
    %p99 = scmp.eq.s32.totalorder %s13, 0
    %p100 = por %p98, %p99
    %p101 = scmp.ne.s32.totalorder %s87, %s88
    %p102 = scmp.eq.s32.totalorder %s14, 1
    %p103 = por %p101, %p102
    %p105 = scmp.ne.s32.totalorder %s88, %s104
    %p106 = scmp.eq.s32.totalorder %s14, 0
    %p107 = por %p105, %p106
    %p108 = scmp.le.s32.totalorder 1, %s8
    %p109 = scmp.lt.s32.totalorder %s8, 3
    %p110 = pnand %p108, %p109
    %p111 = pneg %p110
    // Predicated region
    $region9: #{downblock_forward.1} parent=5 // pred_check
      _
    $region10: #{downblock_forward.1} parent=5 // pred_check_branch
      %113 = sbr.rel (%p110) target = $region12
    $region11: #{downblock_forward.1} parent=5 // pred_region
      %s114 = ssub.s32 %s8, 1
      // Predicated region
      $region13: #{downblock_forward.1} parent=11 // pred_check
        %p115 = pneg %p72
      $region14: #{downblock_forward.1} parent=11 // pred_check_branch
        %117 = sbr.rel (%p115) target = $region16
      $region15: #{downblock_forward.1} parent=11 // pred_region
        %s118 = smul.u32 2, %s18
        %p119 = scmp.lt.s32.totalorder %s118, 1
        %s120 = scalar_select %p119, %s118, 1
        %s121 = smul.addr %s120, 4
        %s122 = scalar_lea.vmem %s1, %s121
        %s123 = smul.u32 2, %s18
      $region16: #{downblock_forward.1} parent=11 // pred_fallthru
        _
    $region12: #{downblock_forward.1} parent=5 // pred_fallthru
      _
    %p124 = scmp.lt.s32.totalorder %s8, 2
    // Predicated region
    $region17: #{downblock_forward.1} parent=5 // pred_check
      %p125 = pneg %p124
    $region18: #{downblock_forward.1} parent=5 // pred_check_branch
      %127 = sbr.rel (%p125) target = $region20
    $region19: #{downblock_forward.1} parent=5 // pred_region
      // Predicated region
      $region21: #{downblock_forward.1} parent=19 // pred_check
        %p128 = pneg %p40
      $region22: #{downblock_forward.1} parent=19 // pred_check_branch
        %130 = sbr.rel (%p128) target = $region24
      $region23: #{downblock_forward.1} parent=19 // pred_region
        %p131 = scmp.lt.s32.totalorder %s15, 1
        %s132 = scalar_select %p131, %s15, 1
        %s133 = smul.addr %s132, 4
        %s134 = smul.addr %s133, 4
        %s135 = scalar_lea.vmem %s0, %s134
      $region24: #{downblock_forward.1} parent=19 // pred_fallthru
        _
    $region20: #{downblock_forward.1} parent=5 // pred_fallthru
      _
    %p136 = scmp.le.s32.totalorder 1, %s8
    %p137 = scmp.lt.s32.totalorder %s8, 3
    %p138 = pnand %p136, %p137
    %p139 = pneg %p138
    // Predicated region
    $region25: #{downblock_forward.1} parent=5 // pred_check
      _
    $region26: #{downblock_forward.1} parent=5 // pred_check_branch
      %141 = sbr.rel (%p138) target = $region28
    $region27: #{downblock_forward.1} parent=5 // pred_region
      %s142 = ssub.s32 %s8, 1
      %p143 = scmp.lt.s32.totalorder %s17, 1
      %s144 = scalar_select %p143, %s17, 1
      %s145 = smul.addr %s144, 4
      %s146 = smul.addr %s145, 4
      %s147 = scalar_lea.vmem %s0, %s146
      %p148 = pneg %p46
      %p149 = pneg %p43
      %s150 = smul.u32 2, %s18
      %p151 = scmp.lt.s32.totalorder %s150, 1
      %s152 = scalar_select %p151, %s150, 1
      %s153 = smul.addr %s152, 4
      %s154 = scalar_lea.vmem %s1, %s153
      %p155 = pneg %p72
      %p156 = pneg %p69
      %p157 = pneg %p100
      %p158 = pneg %p97
      %s159 = smul.u32 2, %s18
      %p160 = scmp.lt.s32.totalorder %s17, 1
      %s161 = scalar_select %p160, %s17, 1
      %p162 = scmp.lt.s32.totalorder %s159, 1
      %s163 = scalar_select %p162, %s159, 1
      %s164 = smul.addr %s161, 2
      %s165 = sadd.s32 %s163, %s164
      %s166 = smul.addr %s165, 8
      %s167 = scalar_lea.vmem %s2, %s166
      %p168 = scmp.lt.s32.totalorder %s17, 1
      %s169 = scalar_select %p168, %s17, 1
      %s170 = smul.addr %s169, 4
      %s171 = smul.addr %s170, 4
      %s172 = scalar_lea.vmem %s0, %s171
      %s173 = smul.u32 2, %s18
      %p174 = scmp.lt.s32.totalorder %s173, 1
      %s175 = scalar_select %p174, %s173, 1
      %s176 = smul.addr %s175, 4
      %s177 = scalar_lea.vmem %s1, %s176
      %s178 = smul.u32 2, %s18
      %s179 = smul.u32 2, %s18
      %p180 = scmp.lt.s32.totalorder %s17, 1
      %s181 = scalar_select %p180, %s17, 1
      %p182 = scmp.lt.s32.totalorder %s179, 1
      %s183 = scalar_select %p182, %s179, 1
      %s184 = smul.addr %s181, 2
      %s185 = sadd.s32 %s183, %s184
      %s186 = smul.addr %s185, 8
      %s187 = scalar_lea.vmem %s2, %s186
      %s188 = smul.u32 2, %s18
      %v190 = vld [vmem:[%s172] sm:$0xff]
      %v191 = vld [vmem:[%s172 + $0x8] sm:$0xff]
      %v192 = vld [vmem:[%s177] sm:$0xf]
      %v193 = vld [vmem:[%s177 + $0x4] sm:$0xf]
      %s194 = scalar_lea.vmem %s177, 8
      %v195 = vld [vmem:[%s194] sm:$0xf]
      %v196 = vld [vmem:[%s194 + $0x4] sm:$0xf]
      %v199 = vunpack.c.l.b16 %v195
      %v200 = vunpack.c.l.b16 %v196
      %v201 = vpack.c.b16 %v200, %v199
      %v204 = vunpack.c.l.b16 %v190
      %v205 = vunpack.c.h.b16 %v190
      %v206 = vunpack.c.l.b16 %v191
      %v207 = vunpack.c.h.b16 %v191
      %v208 = vpack.c.b16 %v206, %v204
      %v209 = vpack.c.b16 %v207, %v205
      %210 = vrot.lane.b32.xlu0 %v208, 127
      %v211 = vpop.permute.xlu0 %210
      %212 = vrot.lane.b32.xlu0 %v209, 127
      %v213 = vpop.permute.xlu0 %212
      %vm214 = vcmask 1039360
      %v215 = vsel %vm214, %v211, %v213
      %vm217 = vcmask 130048
      %v219 = vsel %vm217, %v201, 0
      %221 = vmatprep.subr.bf16.mxu0 0
      %222 = vmatpush1.bf16.msra.mxu0 %v215
      %223 = vmatprep.subr.bf16.mxu0 0
      %224 = vmatpush1.bf16.msra.mxu0 0
      %225 = vmatprep.subr.bf16.mxu0 0
      %226 = vmatpush1.bf16.msra.mxu0 0
      %227 = vmatprep.subr.bf16.mxu0 0
      %228 = vmatpush1.bf16.msra.mxu0 0
      %229 = vmatprep.subr.bf16.mxu0 0
      %230 = vmatpush1.bf16.msra.mxu0 0
      %231 = vmatprep.subr.bf16.mxu0 0
      %232 = vmatpush1.bf16.msra.mxu0 0
      %233 = vmatprep.subr.bf16.mxu0 0
      %234 = vmatpush1.bf16.msra.mxu0 0
      %235 = vmatprep.subr.bf16.mxu0 0
      %236 = vmatpush1.bf16.msra.mxu0 0
      %237 = vmatprep.subr.bf16.mxu0 0
      %238 = vmatpush1.bf16.msra.mxu0 0
      %239 = vmatprep.subr.bf16.mxu0 0
      %240 = vmatpush1.bf16.msra.mxu0 0
      %241 = vmatprep.subr.bf16.mxu0 0
      %242 = vmatpush1.bf16.msra.mxu0 0
      %243 = vmatprep.subr.bf16.mxu0 0
      %244 = vmatpush1.bf16.msra.mxu0 0
      %245 = vmatprep.subr.bf16.mxu0 0
      %246 = vmatpush1.bf16.msra.mxu0 0
      %247 = vmatprep.subr.bf16.mxu0 0
      %248 = vmatpush1.bf16.msra.mxu0 0
      %249 = vmatprep.subr.bf16.mxu0 0
      %250 = vmatpush1.bf16.msra.mxu0 0
      %251 = vmatprep.subr.bf16.mxu0 0
      %252 = vmatpush1.bf16.msra.mxu0 0
      %253 = vmatprep.mubr.bf16.mxu0 0
      %254 = vmatmul.mubr.bf16.gmra.mrb[0].mxu0 %v219
      %v255 = vpop.f32.mrb[0].mxu0
      %v256 = vadd.f32 0.0, %v255
      %v257 = vpop.f32.mrb[0].mxu0
      %v258 = vpop.f32.mrb[0].mxu0
      %v259 = vadd.f32 0.0, %v258
      %v260 = vpop.f32.mrb[0].mxu0
      %261 = vdwg.mxu0
      %v264 = vunpack.c.l.b16 %v192
      %v265 = vunpack.c.l.b16 %v193
      %v266 = vpack.c.b16 %v265, %v264
      %v269 = vsel %vm217, %v266, 0
      %271 = vmatprep.subr.bf16.mxu0 0
      %272 = vmatpush1.bf16.msra.mxu0 %v208
      %273 = vmatprep.subr.bf16.mxu0 0
      %274 = vmatpush1.bf16.msra.mxu0 0
      %275 = vmatprep.subr.bf16.mxu0 0
      %276 = vmatpush1.bf16.msra.mxu0 0
      %277 = vmatprep.subr.bf16.mxu0 0
      %278 = vmatpush1.bf16.msra.mxu0 0
      %279 = vmatprep.subr.bf16.mxu0 0
      %280 = vmatpush1.bf16.msra.mxu0 0
      %281 = vmatprep.subr.bf16.mxu0 0
      %282 = vmatpush1.bf16.msra.mxu0 0
      %283 = vmatprep.subr.bf16.mxu0 0
      %284 = vmatpush1.bf16.msra.mxu0 0
      %285 = vmatprep.subr.bf16.mxu0 0
      %286 = vmatpush1.bf16.msra.mxu0 0
      %287 = vmatprep.subr.bf16.mxu0 0
      %288 = vmatpush1.bf16.msra.mxu0 0
      %289 = vmatprep.subr.bf16.mxu0 0
      %290 = vmatpush1.bf16.msra.mxu0 0
      %291 = vmatprep.subr.bf16.mxu0 0
      %292 = vmatpush1.bf16.msra.mxu0 0
      %293 = vmatprep.subr.bf16.mxu0 0
      %294 = vmatpush1.bf16.msra.mxu0 0
      %295 = vmatprep.subr.bf16.mxu0 0
      %296 = vmatpush1.bf16.msra.mxu0 0
      %297 = vmatprep.subr.bf16.mxu0 0
      %298 = vmatpush1.bf16.msra.mxu0 0
      %299 = vmatprep.subr.bf16.mxu0 0
      %300 = vmatpush1.bf16.msra.mxu0 0
      %301 = vmatprep.subr.bf16.mxu0 0
      %302 = vmatpush1.bf16.msra.mxu0 0
      %303 = vmatprep.mubr.bf16.mxu0 0
      %304 = vmatmul.mubr.bf16.gmra.mrb[0].mxu0 %v269
      %v305 = vpop.f32.mrb[0].mxu0
      %v306 = vadd.f32 %v256, %v305
      %v307 = vpop.f32.mrb[0].mxu0
      %v308 = vpop.f32.mrb[0].mxu0
      %v309 = vadd.f32 %v259, %v308
      %v310 = vpop.f32.mrb[0].mxu0
      %311 = vdwg.mxu0
      %s312 = scalar_lea.vmem %s177, 16
      %v313 = vld [vmem:[%s312] sm:$0xf]
      %v314 = vld [vmem:[%s312 + $0x4] sm:$0xf]
      %v317 = vunpack.c.l.b16 %v313
      %v318 = vunpack.c.l.b16 %v314
      %v319 = vpack.c.b16 %v318, %v317
      %320 = vrot.lane.b32.xlu0 %v208, 119
      %v321 = vpop.permute.xlu0 %320
      %322 = vrot.lane.b32.xlu0 %v209, 119
      %v323 = vpop.permute.xlu0 %322
      %vm324 = vcmask 973824
      %v325 = vsel %vm324, %v321, %v323
      %v328 = vsel %vm217, %v319, 0
      %330 = vmatprep.subr.bf16.mxu0 0
      %331 = vmatpush1.bf16.msra.mxu0 %v325
      %332 = vmatprep.subr.bf16.mxu0 0
      %333 = vmatpush1.bf16.msra.mxu0 0
      %334 = vmatprep.subr.bf16.mxu0 0
      %335 = vmatpush1.bf16.msra.mxu0 0
      %336 = vmatprep.subr.bf16.mxu0 0
      %337 = vmatpush1.bf16.msra.mxu0 0
      %338 = vmatprep.subr.bf16.mxu0 0
      %339 = vmatpush1.bf16.msra.mxu0 0
      %340 = vmatprep.subr.bf16.mxu0 0
      %341 = vmatpush1.bf16.msra.mxu0 0
      %342 = vmatprep.subr.bf16.mxu0 0
      %343 = vmatpush1.bf16.msra.mxu0 0
      %344 = vmatprep.subr.bf16.mxu0 0
      %345 = vmatpush1.bf16.msra.mxu0 0
      %346 = vmatprep.subr.bf16.mxu0 0
      %347 = vmatpush1.bf16.msra.mxu0 0
      %348 = vmatprep.subr.bf16.mxu0 0
      %349 = vmatpush1.bf16.msra.mxu0 0
      %350 = vmatprep.subr.bf16.mxu0 0
      %351 = vmatpush1.bf16.msra.mxu0 0
      %352 = vmatprep.subr.bf16.mxu0 0
      %353 = vmatpush1.bf16.msra.mxu0 0
      %354 = vmatprep.subr.bf16.mxu0 0
      %355 = vmatpush1.bf16.msra.mxu0 0
      %356 = vmatprep.subr.bf16.mxu0 0
      %357 = vmatpush1.bf16.msra.mxu0 0
      %358 = vmatprep.subr.bf16.mxu0 0
      %359 = vmatpush1.bf16.msra.mxu0 0
      %360 = vmatprep.subr.bf16.mxu0 0
      %361 = vmatpush1.bf16.msra.mxu0 0
      %362 = vmatprep.mubr.bf16.mxu0 0
      %363 = vmatmul.mubr.bf16.gmra.mrb[0].mxu0 %v328
      %v364 = vpop.f32.mrb[0].mxu0
      %v365 = vadd.f32 0.0, %v364
      %v366 = vpop.f32.mrb[0].mxu0
      %v367 = vpop.f32.mrb[0].mxu0
      %v368 = vadd.f32 0.0, %v367
      %v369 = vpop.f32.mrb[0].mxu0
      %370 = vdwg.mxu0
      %v371 = vadd.f32 %v306, %v365
      %v372 = vadd.f32 %v309, %v368
      %s373 = scalar_lea.vmem %s177, 24
      %v374 = vld [vmem:[%s373] sm:$0xf]
      %v375 = vld [vmem:[%s373 + $0x4] sm:$0xf]
      %v378 = vunpack.c.l.b16 %v374
      %v379 = vunpack.c.l.b16 %v375
      %v380 = vpack.c.b16 %v379, %v378
      %381 = vrot.lane.b32.xlu0 %v208, 118
      %v382 = vpop.permute.xlu0 %381
      %383 = vrot.lane.b32.xlu0 %v209, 118
      %v384 = vpop.permute.xlu0 %383
      %vm385 = vcmask 965632
      %v386 = vsel %vm385, %v382, %v384
      %v389 = vsel %vm217, %v380, 0
      %391 = vmatprep.subr.bf16.mxu0 0
      %392 = vmatpush1.bf16.msra.mxu0 %v386
      %393 = vmatprep.subr.bf16.mxu0 0
      %394 = vmatpush1.bf16.msra.mxu0 0
      %395 = vmatprep.subr.bf16.mxu0 0
      %396 = vmatpush1.bf16.msra.mxu0 0
      %397 = vmatprep.subr.bf16.mxu0 0
      %398 = vmatpush1.bf16.msra.mxu0 0
      %399 = vmatprep.subr.bf16.mxu0 0
      %400 = vmatpush1.bf16.msra.mxu0 0
      %401 = vmatprep.subr.bf16.mxu0 0
      %402 = vmatpush1.bf16.msra.mxu0 0
      %403 = vmatprep.subr.bf16.mxu0 0
      %404 = vmatpush1.bf16.msra.mxu0 0
      %405 = vmatprep.subr.bf16.mxu0 0
      %406 = vmatpush1.bf16.msra.mxu0 0
      %407 = vmatprep.subr.bf16.mxu0 0
      %408 = vmatpush1.bf16.msra.mxu0 0
      %409 = vmatprep.subr.bf16.mxu0 0
      %410 = vmatpush1.bf16.msra.mxu0 0
      %411 = vmatprep.subr.bf16.mxu0 0
      %412 = vmatpush1.bf16.msra.mxu0 0
      %413 = vmatprep.subr.bf16.mxu0 0
      %414 = vmatpush1.bf16.msra.mxu0 0
      %415 = vmatprep.subr.bf16.mxu0 0
      %416 = vmatpush1.bf16.msra.mxu0 0
      %417 = vmatprep.subr.bf16.mxu0 0
      %418 = vmatpush1.bf16.msra.mxu0 0
      %419 = vmatprep.subr.bf16.mxu0 0
      %420 = vmatpush1.bf16.msra.mxu0 0
      %421 = vmatprep.subr.bf16.mxu0 0
      %422 = vmatpush1.bf16.msra.mxu0 0
      %423 = vmatprep.mubr.bf16.mxu0 0
      %424 = vmatmul.mubr.bf16.gmra.mrb[0].mxu0 %v389
      %v425 = vpop.f32.mrb[0].mxu0
      %v426 = vadd.f32 0.0, %v425
      %v427 = vpop.f32.mrb[0].mxu0
      %v428 = vpop.f32.mrb[0].mxu0
      %v429 = vadd.f32 0.0, %v428
      %v430 = vpop.f32.mrb[0].mxu0
      %431 = vdwg.mxu0
      %v432 = vadd.f32 %v371, %v426
      %v433 = vadd.f32 %v372, %v429
      %v434 = vlaneseq
      %v435 = vand.u32 %v434, 127
      %vm436 = vcmp.lt.s32.totalorder %v435, 72
      %vm437 = vcmp.lt.s32.totalorder %v435, 0
      %v438 = vsub.s32 0, %v435
      %v439 = vsel %vm437, %v438, %v435
      %v440 = vmul.u32.u64.compose %v439, 3817748708
      %v441 = vextract.low.u32 %v440
      %v442 = vextract.high.u32 %v440
      %v443 = vshrl.u32 %v442, 3
      %v444 = vmul.u32 %v443, 9
      %v445 = vsub.s32 %v439, %v444
      %v446 = vsub.s32 0, %v445
      %v447 = vsel %vm437, %v446, %v445
      %vm448 = vcmp.ne.s32.totalorder %v447, 0
      %vm449 = vcmp.lt.s32.totalorder %v447, 0
      %vm450 = vmand %vm449, %vm448
      %v451 = vadd.s32 %v447, 9
      %v452 = vsel %vm450, %v451, %v447
      %vm453 = vcmp.lt.s32.totalorder %v452, 8
      %vm454 = vmand %vm436, %vm453
      %v455 = vsel %vm454, 1, 0
      %v456 = vcvt.s32.f32 %v455
      %v457 = vmul.f32 %v432, %v456
      %v458 = vmul.f32 %v433, %v456
      %459 = vadd.xlane.f32.xlu0 %v457
      %v460 = vpop.xlane.xlu0 %459
      %461 = vadd.xlane.f32.xlu0 %v458
      %v462 = vpop.xlane.xlu0 %461
      %v463 = vmul.f32 %v457, %v432
      %v464 = vmul.f32 %v458, %v433
      %465 = vadd.xlane.f32.xlu0 %v463
      %v466 = vpop.xlane.xlu0 %465
      %467 = vadd.xlane.f32.xlu0 %v464
      %v468 = vpop.xlane.xlu0 %467
      %v469 = vmul.f32 %v460, 0.015625
      %v470 = vmul.f32 %v462, 0.015625
      %v471 = vmul.f32 %v466, 0.015625
      %v472 = vmul.f32 %v468, 0.015625
      %v473 = vmul.f32 %v469, %v469
      %v474 = vmul.f32 %v470, %v470
      %v475 = vsub.f32 %v471, %v473
      %v476 = vsub.f32 %v472, %v474
      %v477 = vmax.f32 %v475, 0.0
      %v478 = vmax.f32 %v476, 0.0
      %v479 = vsub.f32 %v432, %v469
      %v480 = vsub.f32 %v433, %v470
      %v481 = vadd.f32 %v477, 1e-05
      %v482 = vadd.f32 %v478, 1e-05
      %v483 = vrsqrt.pop %v481
      %v484 = vrsqrt.pop %v482
      %v485 = vmul.f32 %v479, %v483
      %v486 = vmul.f32 %v480, %v484
      %v487 = vmax.f32 %v485, 0.0
      %v488 = vmax.f32 %v486, 0.0
      %489 = vst [vmem:[%s187] sm:$0xff] %v487
      %490 = vst [vmem:[%s187 + $0x8] sm:$0xff] %v488
      %s491 = smul.u32 2, %s18
      %p492 = scmp.lt.s32.totalorder %s17, 1
      %s493 = scalar_select %p492, %s17, 1
      %p494 = scmp.lt.s32.totalorder %s491, 1
      %s495 = scalar_select %p494, %s491, 1
      %s496 = smul.addr %s493, 2
      %s497 = sadd.s32 %s495, %s496
      %s498 = smul.addr %s497, 8
      %s499 = scalar_lea.vmem %s2, %s498
      // Predicated region
      $region29: #{downblock_forward.1} parent=27 // pred_check
        %p500 = pneg %p97
      $region30: #{downblock_forward.1} parent=27 // pred_check_branch
        %502 = sbr.rel (%p500) target = $region32
      $region31: #{downblock_forward.1} parent=27 // pred_region
        %s503 = smul.u32 2, %s18
      $region32: #{downblock_forward.1} parent=27 // pred_fallthru
        _
    $region28: #{downblock_forward.1} parent=5 // pred_fallthru
      _
    %p504 = scmp.le.s32.totalorder 2, %s8
    // Predicated region
    $region33: #{downblock_forward.1} parent=5 // pred_check
      %p505 = pneg %p504
    $region34: #{downblock_forward.1} parent=5 // pred_check_branch
      %507 = sbr.rel (%p505) target = $region36
    $region35: #{downblock_forward.1} parent=5 // pred_region
      %s508 = ssub.s32 %s8, 2
      // Predicated region
      $region37: #{downblock_forward.1} parent=35 // pred_check
        %p509 = pneg %p103
      $region38: #{downblock_forward.1} parent=35 // pred_check_branch
        %511 = sbr.rel (%p509) target = $region40
      $region39: #{downblock_forward.1} parent=35 // pred_region
        %s512 = smul.u32 2, %s20
        %p513 = scmp.lt.s32.totalorder %s19, 1
        %s514 = scalar_select %p513, %s19, 1
        %p515 = scmp.lt.s32.totalorder %s512, 1
        %s516 = scalar_select %p515, %s512, 1
        %s517 = smul.addr %s514, 2
        %s518 = sadd.s32 %s516, %s517
        %s519 = smul.addr %s518, 8
        %s520 = scalar_lea.vmem %s2, %s519
      $region40: #{downblock_forward.1} parent=35 // pred_fallthru
        _
    $region36: #{downblock_forward.1} parent=5 // pred_fallthru
      _
  $region6: #{downblock_forward.1} parent=0 // loop_footer
    %s12 = sadd.s32 1, %s8
  $region7: #{downblock_forward.1} parent=0 // loop_footer_branch
    %7 = sbr.rel target = $region3
  $region8: #{downblock_forward.1} parent=0 // loop_exit
    _

</llo_original>
